<compile_context>
chip_gen: v5e
topology: v5e:2x2
jax: 0.10.0
libtpu: 0.0.40
codegen_flags: <defaults>
</compile_context>

<pallas_src>
import jax
import jax.numpy as jnp
from jax.experimental import pallas as pl
from jax.experimental.pallas import tpu as pltpu

SMOOTH = 1e-05
LANE = 128                           # vreg lane width
TARGET_STEP_BYTES = 2 * 1024 * 1024  # ~2 MiB of streamed input per grid step
MAX_SUBLANE_TILE = 1024              # hard cap on the sublane tile
COMPUTE_CHUNK = 64                   # sublanes per in-kernel compute chunk


def _cdiv(a, b):
    return -(-a // b)


def _round_up(x, m):
    return ((x + m - 1) // m) * m


def _num_tensorcores():
    """TensorCores per chip (2 on megacore-style parts such as v7x, else 1)."""
    try:
        info = pltpu.get_tpu_info()
        for attr in ("num_cores", "core_count", "num_tensorcores",
                     "tensorcore_count", "num_tensor_cores"):
            v = getattr(info, attr, None)
            if isinstance(v, int) and 1 <= v <= 16:
                return v
    except Exception:
        pass
    return 1


def _make_dice_kernel(N, C, TS, CHUNK):
    n_chunks = TS // CHUNK
    groups = CHUNK // 8

    def _fold8(x):
        # (N, CHUNK, 128) -> (N, 8, 128): sum groups of 8 sublanes.  Pure
        # elementwise vreg adds (no XLU); shrinks accumulator RMW traffic by
        # CHUNK/8 before touching the VMEM accumulators.
        out = x[:, 0:8, :]
        for g in range(1, groups):
            out = out + x[:, g * 8:(g + 1) * 8, :]
        return out

    def kernel(pred_ref, tgt_ref, mask_ref, inter_ref, union_ref, acc_i, acc_u):
        # pred_ref : (N, C, TS, 128) logits (source dtype; upcast in-kernel)
        # tgt_ref  : (N, TS, 128) int32 labels (padded pixels hold label == C)
        # mask_ref : (TS, 128) f32 validity mask (0 on padded pixels)
        # inter_ref / union_ref : (1, C, N, 8, 128) f32 per-split partials
        # acc_i / acc_u         : (C, N, 8, 128) f32 VMEM accumulators
        k = pl.program_id(1)

        @pl.when(k == 0)
        def _init():
            acc_i[...] = jnp.zeros_like(acc_i)
            acc_u[...] = jnp.zeros_like(acc_u)

        # The DMA block is big (TS rows) for HBM bandwidth; the compute walks
        # it in fixed CHUNK-row slabs (static slice starts) so per-chunk
        # temporaries stay bounded.
        for ci in range(n_chunks):
            s0 = ci * CHUNK
            p = pred_ref[:, :, s0:s0 + CHUNK, :].astype(jnp.float32)  # (N,C,CH,128)
            t = tgt_ref[:, s0:s0 + CHUNK, :]                          # (N,CH,128)
            msk = mask_ref[s0:s0 + CHUNK, :]                          # (CH,128)

            # Channel softmax on full-density slabs.  axis=1 is a non-minor
            # axis, so max/sum are plain elementwise vreg ops (no XLU).
            m = jnp.max(p, axis=1)                      # (N,CH,128)
            e = jnp.exp(p - m[:, None])                 # (N,C,CH,128)  EUP
            denom = jnp.sum(e, axis=1)                  # (N,CH,128), >= 1
            inv = pl.reciprocal(denom, approx=True)     # EUP vrcp
            inv = inv * (2.0 - denom * inv)             # one Newton step
            inv = inv * msk[None]                       # zero padded pixels

            for c in range(C):
                sm_c = e[:, c] * inv                    # masked softmax chan c
                oh_c = (t == c).astype(jnp.float32)     # implicit one-hot
                acc_i[c] += _fold8(sm_c * oh_c)
                acc_u[c] += _fold8(sm_c + oh_c)

        @pl.when(k == pl.num_programs(1) - 1)
        def _finalize():
            # Lane-dense (8, 128)-slab outputs; the tiny cross-lane reduction
            # is finished outside the kernel in plain JAX.
            inter_ref[...] = acc_i[...][None]
            union_ref[...] = acc_u[...][None]

    return kernel


def dice_loss(predictions, target, smooth=SMOOTH, splits=None):
    """predictions: (N, C, H, W) float logits; target: (N, H, W) int labels."""
    N, C, H, W = predictions.shape
    HW = H * W
    itemsize = jnp.dtype(predictions.dtype).itemsize

    # ---- tiling choices ---------------------------------------------------
    R = _cdiv(HW, LANE)                   # rows of 128 pixels (last may be ragged)
    r8 = _round_up(R, 8)
    bytes_per_row = (N * C * itemsize + N * 4 + 4) * LANE
    ts_cap = max(8, min(MAX_SUBLANE_TILE,
                        (TARGET_STEP_BYTES // bytes_per_row) // 8 * 8))
    if r8 <= 64:
        TS = r8                            # tiny input: one short tile
    else:
        TS = min(_round_up(r8, 64), max(64, (ts_cap // 64) * 64))
    CHUNK = min(COMPUTE_CHUNK, TS)

    num_tiles = _cdiv(R, TS)
    if splits is None:
        splits = 2 if (_num_tensorcores() >= 2 and num_tiles >= 2) else 1
    splits = max(1, min(int(splits), num_tiles))
    tps = _cdiv(num_tiles, splits)         # tiles per split (reduction axis)
    R_pad = splits * tps * TS
    pad = R_pad * LANE - HW

    # ---- layout: channel slabs with full sublane density -------------------
    pred_flat = predictions.reshape(N, C, HW)
    tgt_flat = target.reshape(N, HW).astype(jnp.int32)
    mask_flat = jnp.ones((HW,), jnp.float32)
    if pad:
        pred_flat = jnp.pad(pred_flat, ((0, 0), (0, 0), (0, pad)))
        # Out-of-range label on padded pixels -> one-hot identically zero.
        tgt_flat = jnp.pad(tgt_flat, ((0, 0), (0, pad)), constant_values=C)
        mask_flat = jnp.pad(mask_flat, (0, pad))
    pred4d = pred_flat.reshape(N, C, R_pad, LANE)
    tgt3d = tgt_flat.reshape(N, R_pad, LANE)
    mask2d = mask_flat.reshape(R_pad, LANE)

    kernel = _make_dice_kernel(N, C, TS, CHUNK)

    # Tight, explicit VMEM budget: double-buffered input blocks + accumulators
    # + outputs + per-chunk temporaries, with headroom.  Well under physical
    # VMEM on v5e/v6e (128 MiB) and v7x (64 MiB).
    in_block_bytes = (N * C * itemsize + N * 4 + 4) * TS * LANE
    acc_out_bytes = 4 * C * N * 8 * LANE * 4
    tmp_bytes = 6 * N * C * CHUNK * LANE * 4
    vmem_limit = int(min(64 * 1024 * 1024,
                         max(16 * 1024 * 1024,
                             2 * in_block_bytes + acc_out_bytes + tmp_bytes
                             + (4 << 20))))

    inter_parts, union_parts = pl.pallas_call(
        kernel,
        out_shape=(
            jax.ShapeDtypeStruct((splits, C, N, 8, LANE), jnp.float32),
            jax.ShapeDtypeStruct((splits, C, N, 8, LANE), jnp.float32),
        ),
        grid_spec=pltpu.PrefetchScalarGridSpec(
            num_scalar_prefetch=0,
            grid=(splits, tps),
            in_specs=[
                pl.BlockSpec((N, C, TS, LANE), lambda s, k: (0, 0, s * tps + k, 0)),
                pl.BlockSpec((N, TS, LANE), lambda s, k: (0, s * tps + k, 0)),
                pl.BlockSpec((TS, LANE), lambda s, k: (s * tps + k, 0)),
            ],
            out_specs=[
                pl.BlockSpec((1, C, N, 8, LANE), lambda s, k: (s, 0, 0, 0, 0)),
                pl.BlockSpec((1, C, N, 8, LANE), lambda s, k: (s, 0, 0, 0, 0)),
            ],
            scratch_shapes=[
                pltpu.VMEM((C, N, 8, LANE), jnp.float32),   # partial intersection
                pltpu.VMEM((C, N, 8, LANE), jnp.float32),   # partial union
            ],
        ),
        compiler_params=pltpu.CompilerParams(
            dimension_semantics=("parallel", "arbitrary"),
            vmem_limit_bytes=vmem_limit,
        ),
    )(pred4d, tgt3d, mask2d)

    # O(C*N) finish in plain JAX: combine splits & slabs, dice, mean.
    intersection = inter_parts.sum(axis=(0, 3, 4))   # (C, N)
    union = union_parts.sum(axis=(0, 3, 4))          # (C, N)
    dice = (2.0 * intersection + smooth) / (union + smooth)
    return 1.0 - dice.mean()


def _reference(predictions, target, smooth=SMOOTH):
    """Pure-JAX reference matching the PyTorch module semantics."""
    C = predictions.shape[1]
    sm = jax.nn.softmax(predictions, axis=1)
    oh = jax.nn.one_hot(target, C, dtype=jnp.float32).transpose(0, 3, 1, 2)
    inter = (sm * oh).sum(axis=(2, 3))
    union = sm.sum(axis=(2, 3)) + oh.sum(axis=(2, 3))
    dice = (2.0 * inter + smooth) / (union + smooth)
    return 1.0 - dice.mean()


if __name__ == "__main__":
    key = jax.random.PRNGKey(0)
    cases = [
        ((2, 4, 16, 16), None),      # tiny single tile (+ sublane padding)
        ((2, 4, 64, 64), None),      # exact single tile, no padding
        ((2, 4, 256, 256), None),    # multi-tile accumulator + spatial padding
        ((2, 4, 256, 256), 2),       # forced 2-way split (v7x megacore path)
        ((2, 3, 15, 15), None),      # ragged HW (not a multiple of 128), odd C
    ]
    for shape, forced_splits in cases:
        N, C, H, W = shape
        key, k_pred, k_tgt = jax.random.split(key, 3)
        predictions = jax.random.normal(k_pred, shape, dtype=jnp.float32)
        target = jax.random.randint(k_tgt, (N, H, W), 0, C, dtype=jnp.int32)

        loss = dice_loss(predictions, target, splits=forced_splits)
        jax.block_until_ready(loss)
        ref = _reference(predictions, target)
        assert jnp.allclose(loss, ref, atol=1e-5, rtol=1e-5), (
            shape, forced_splits, float(loss), float(ref))
    print("KERNEL_OK")
</pallas_src>

<mosaic_0001>
module attributes {stable_mosaic.version = 11 : i64} {
  func.func @kernel(%arg0: i32, %arg1: i32, %arg2: memref<2x4x8x128xf32, #tpu.memory_space<vmem>>, %arg3: memref<2x8x128xi32, #tpu.memory_space<vmem>>, %arg4: memref<8x128xf32, #tpu.memory_space<vmem>>, %arg5: memref<1x4x2x8x128xf32, #tpu.memory_space<vmem>>, %arg6: memref<1x4x2x8x128xf32, #tpu.memory_space<vmem>>, %arg7: memref<4x2x8x128xf32, #tpu.memory_space<vmem>>, %arg8: memref<4x2x8x128xf32, #tpu.memory_space<vmem>>) attributes {dimension_semantics = [#tpu.dimension_semantics<parallel>, #tpu.dimension_semantics<arbitrary>], iteration_bounds = array<i64: 1, 1>, scalar_prefetch = 0 : i64, scratch_operands = 2 : i64, tpu.core_type = #tpu.core_type<tc>, window_params = [{transform_indices = @transform_0, window_bounds = array<i64: 2, 4, 8, 128>}, {transform_indices = @transform_1, window_bounds = array<i64: 2, 8, 128>}, {transform_indices = @transform_2, window_bounds = array<i64: 8, 128>}, {transform_indices = @transform_3, window_bounds = array<i64: 1, 4, 2, 8, 128>}, {transform_indices = @transform_4, window_bounds = array<i64: 1, 4, 2, 8, 128>}]} {
    %c0_i32 = arith.constant 0 : i32
    %0 = arith.cmpi eq, %arg1, %c0_i32 : i32
    %1 = arith.extui %0 : i1 to i32
    %c0_i32_0 = arith.constant 0 : i32
    %2 = arith.cmpi ne, %1, %c0_i32_0 : i32
    scf.if %2 {
      %cst_75 = arith.constant 0.000000e+00 : f32
      %107 = vector.broadcast %cst_75 : f32 to vector<4x2x8x128xf32>
      %c0_76 = arith.constant 0 : index
      %c0_77 = arith.constant 0 : index
      %c0_78 = arith.constant 0 : index
      %c0_79 = arith.constant 0 : index
      %108 = vector.load %arg7[%c0_76, %c0_77, %c0_78, %c0_79] : memref<4x2x8x128xf32, #tpu.memory_space<vmem>>, vector<4x2x8x128xf32>
      tpu.vector_store %arg7[%c0_76, %c0_77, %c0_78, %c0_79], %107 {strides = array<i32>} : memref<4x2x8x128xf32, #tpu.memory_space<vmem>>, vector<4x2x8x128xf32>,
      %cst_80 = arith.constant 0.000000e+00 : f32
      %109 = vector.broadcast %cst_80 : f32 to vector<4x2x8x128xf32>
      %c0_81 = arith.constant 0 : index
      %c0_82 = arith.constant 0 : index
      %c0_83 = arith.constant 0 : index
      %c0_84 = arith.constant 0 : index
      %110 = vector.load %arg8[%c0_81, %c0_82, %c0_83, %c0_84] : memref<4x2x8x128xf32, #tpu.memory_space<vmem>>, vector<4x2x8x128xf32>
      tpu.vector_store %arg8[%c0_81, %c0_82, %c0_83, %c0_84], %109 {strides = array<i32>} : memref<4x2x8x128xf32, #tpu.memory_space<vmem>>, vector<4x2x8x128xf32>,
    } else {
    }
    %c0 = arith.constant 0 : index
    %c0_1 = arith.constant 0 : index
    %c0_2 = arith.constant 0 : index
    %c0_3 = arith.constant 0 : index
    %3 = vector.load %arg2[%c0, %c0_1, %c0_2, %c0_3] : memref<2x4x8x128xf32, #tpu.memory_space<vmem>>, vector<2x4x8x128xf32>
    %c0_4 = arith.constant 0 : index
    %c0_5 = arith.constant 0 : index
    %c0_6 = arith.constant 0 : index
    %4 = vector.load %arg3[%c0_4, %c0_5, %c0_6] : memref<2x8x128xi32, #tpu.memory_space<vmem>>, vector<2x8x128xi32>
    %c0_7 = arith.constant 0 : index
    %c0_8 = arith.constant 0 : index
    %5 = vector.load %arg4[%c0_7, %c0_8] : memref<8x128xf32, #tpu.memory_space<vmem>>, vector<8x128xf32>
    %cst = arith.constant dense<0xFF800000> : vector<2x8x128xf32>
    %6 = vector.multi_reduction <maximumf>, %3, %cst [1] : vector<2x4x8x128xf32> to vector<2x8x128xf32>
    %7 = vector.shape_cast %6 : vector<2x8x128xf32> to vector<2x1x8x128xf32>
    %8 = vector.broadcast %7 : vector<2x1x8x128xf32> to vector<2x4x8x128xf32>
    %9 = arith.subf %3, %8 : vector<2x4x8x128xf32>
    %10 = math.exp %9 : vector<2x4x8x128xf32>
    %cst_9 = arith.constant dense<0.000000e+00> : vector<2x8x128xf32>
    %11 = vector.multi_reduction <add>, %10, %cst_9 [1] : vector<2x4x8x128xf32> to vector<2x8x128xf32>
    %12 = tpu.reciprocal %11 {approx = true} : vector<2x8x128xf32> -> vector<2x8x128xf32>
    %13 = arith.mulf %11, %12 : vector<2x8x128xf32>
    %cst_10 = arith.constant 2.000000e+00 : f32
    %14 = vector.broadcast %cst_10 : f32 to vector<2x8x128xf32>
    %15 = arith.subf %14, %13 : vector<2x8x128xf32>
    %16 = arith.mulf %12, %15 : vector<2x8x128xf32>
    %17 = vector.shape_cast %5 : vector<8x128xf32> to vector<1x8x128xf32>
    %18 = vector.broadcast %17 : vector<1x8x128xf32> to vector<2x8x128xf32>
    %19 = arith.mulf %16, %18 : vector<2x8x128xf32>
    %20 = vector.extract_strided_slice %10 {offsets = [0, 0, 0, 0], sizes = [2, 1, 8, 128], strides = [1, 1, 1, 1]} : vector<2x4x8x128xf32> to vector<2x1x8x128xf32>
    %21 = vector.shape_cast %20 : vector<2x1x8x128xf32> to vector<2x8x128xf32>
    %22 = arith.mulf %21, %19 : vector<2x8x128xf32>
    %c0_i32_11 = arith.constant 0 : i32
    %23 = vector.broadcast %c0_i32_11 : i32 to vector<2x8x128xi32>
    %24 = arith.cmpi eq, %4, %23 : vector<2x8x128xi32>
    %25 = arith.extui %24 : vector<2x8x128xi1> to vector<2x8x128xi32>
    %26 = arith.sitofp %25 : vector<2x8x128xi32> to vector<2x8x128xf32>
    %c0_12 = arith.constant 0 : index
    %c0_13 = arith.constant 0 : index
    %c0_14 = arith.constant 0 : index
    %c0_15 = arith.constant 0 : index
    %27 = vector.load %arg7[%c0_12, %c0_13, %c0_14, %c0_15] : memref<4x2x8x128xf32, #tpu.memory_space<vmem>>, vector<1x2x8x128xf32>
    %28 = vector.shape_cast %27 : vector<1x2x8x128xf32> to vector<2x8x128xf32>
    %29 = arith.mulf %22, %26 : vector<2x8x128xf32>
    %30 = arith.addf %28, %29 : vector<2x8x128xf32>
    %c0_16 = arith.constant 0 : index
    %c0_17 = arith.constant 0 : index
    %c0_18 = arith.constant 0 : index
    %c0_19 = arith.constant 0 : index
    %31 = vector.load %arg7[%c0_16, %c0_17, %c0_18, %c0_19] : memref<4x2x8x128xf32, #tpu.memory_space<vmem>>, vector<1x2x8x128xf32>
    %32 = vector.shape_cast %31 : vector<1x2x8x128xf32> to vector<2x8x128xf32>
    %33 = vector.shape_cast %30 : vector<2x8x128xf32> to vector<1x2x8x128xf32>
    tpu.vector_store %arg7[%c0_16, %c0_17, %c0_18, %c0_19], %33 {strides = array<i32>} : memref<4x2x8x128xf32, #tpu.memory_space<vmem>>, vector<1x2x8x128xf32>,
    %c0_20 = arith.constant 0 : index
    %c0_21 = arith.constant 0 : index
    %c0_22 = arith.constant 0 : index
    %c0_23 = arith.constant 0 : index
    %34 = vector.load %arg8[%c0_20, %c0_21, %c0_22, %c0_23] : memref<4x2x8x128xf32, #tpu.memory_space<vmem>>, vector<1x2x8x128xf32>
    %35 = vector.shape_cast %34 : vector<1x2x8x128xf32> to vector<2x8x128xf32>
    %36 = arith.addf %22, %26 : vector<2x8x128xf32>
    %37 = arith.addf %35, %36 : vector<2x8x128xf32>
    %c0_24 = arith.constant 0 : index
    %c0_25 = arith.constant 0 : index
    %c0_26 = arith.constant 0 : index
    %c0_27 = arith.constant 0 : index
    %38 = vector.load %arg8[%c0_24, %c0_25, %c0_26, %c0_27] : memref<4x2x8x128xf32, #tpu.memory_space<vmem>>, vector<1x2x8x128xf32>
    %39 = vector.shape_cast %38 : vector<1x2x8x128xf32> to vector<2x8x128xf32>
    %40 = vector.shape_cast %37 : vector<2x8x128xf32> to vector<1x2x8x128xf32>
    tpu.vector_store %arg8[%c0_24, %c0_25, %c0_26, %c0_27], %40 {strides = array<i32>} : memref<4x2x8x128xf32, #tpu.memory_space<vmem>>, vector<1x2x8x128xf32>,
    %41 = vector.extract_strided_slice %10 {offsets = [0, 1, 0, 0], sizes = [2, 1, 8, 128], strides = [1, 1, 1, 1]} : vector<2x4x8x128xf32> to vector<2x1x8x128xf32>
    %42 = vector.shape_cast %41 : vector<2x1x8x128xf32> to vector<2x8x128xf32>
    %43 = arith.mulf %42, %19 : vector<2x8x128xf32>
    %c1_i32 = arith.constant 1 : i32
    %44 = vector.broadcast %c1_i32 : i32 to vector<2x8x128xi32>
    %45 = arith.cmpi eq, %4, %44 : vector<2x8x128xi32>
    %46 = arith.extui %45 : vector<2x8x128xi1> to vector<2x8x128xi32>
    %47 = arith.sitofp %46 : vector<2x8x128xi32> to vector<2x8x128xf32>
    %c1 = arith.constant 1 : index
    %c0_28 = arith.constant 0 : index
    %c0_29 = arith.constant 0 : index
    %c0_30 = arith.constant 0 : index
    %48 = vector.load %arg7[%c1, %c0_28, %c0_29, %c0_30] : memref<4x2x8x128xf32, #tpu.memory_space<vmem>>, vector<1x2x8x128xf32>
    %49 = vector.shape_cast %48 : vector<1x2x8x128xf32> to vector<2x8x128xf32>
    %50 = arith.mulf %43, %47 : vector<2x8x128xf32>
    %51 = arith.addf %49, %50 : vector<2x8x128xf32>
    %c1_31 = arith.constant 1 : index
    %c0_32 = arith.constant 0 : index
    %c0_33 = arith.constant 0 : index
    %c0_34 = arith.constant 0 : index
    %52 = vector.load %arg7[%c1_31, %c0_32, %c0_33, %c0_34] : memref<4x2x8x128xf32, #tpu.memory_space<vmem>>, vector<1x2x8x128xf32>
    %53 = vector.shape_cast %52 : vector<1x2x8x128xf32> to vector<2x8x128xf32>
    %54 = vector.shape_cast %51 : vector<2x8x128xf32> to vector<1x2x8x128xf32>
    tpu.vector_store %arg7[%c1_31, %c0_32, %c0_33, %c0_34], %54 {strides = array<i32>} : memref<4x2x8x128xf32, #tpu.memory_space<vmem>>, vector<1x2x8x128xf32>,
    %c1_35 = arith.constant 1 : index
    %c0_36 = arith.constant 0 : index
    %c0_37 = arith.constant 0 : index
    %c0_38 = arith.constant 0 : index
    %55 = vector.load %arg8[%c1_35, %c0_36, %c0_37, %c0_38] : memref<4x2x8x128xf32, #tpu.memory_space<vmem>>, vector<1x2x8x128xf32>
    %56 = vector.shape_cast %55 : vector<1x2x8x128xf32> to vector<2x8x128xf32>
    %57 = arith.addf %43, %47 : vector<2x8x128xf32>
    %58 = arith.addf %56, %57 : vector<2x8x128xf32>
    %c1_39 = arith.constant 1 : index
    %c0_40 = arith.constant 0 : index
    %c0_41 = arith.constant 0 : index
    %c0_42 = arith.constant 0 : index
    %59 = vector.load %arg8[%c1_39, %c0_40, %c0_41, %c0_42] : memref<4x2x8x128xf32, #tpu.memory_space<vmem>>, vector<1x2x8x128xf32>
    %60 = vector.shape_cast %59 : vector<1x2x8x128xf32> to vector<2x8x128xf32>
    %61 = vector.shape_cast %58 : vector<2x8x128xf32> to vector<1x2x8x128xf32>
    tpu.vector_store %arg8[%c1_39, %c0_40, %c0_41, %c0_42], %61 {strides = array<i32>} : memref<4x2x8x128xf32, #tpu.memory_space<vmem>>, vector<1x2x8x128xf32>,
    %62 = vector.extract_strided_slice %10 {offsets = [0, 2, 0, 0], sizes = [2, 1, 8, 128], strides = [1, 1, 1, 1]} : vector<2x4x8x128xf32> to vector<2x1x8x128xf32>
    %63 = vector.shape_cast %62 : vector<2x1x8x128xf32> to vector<2x8x128xf32>
    %64 = arith.mulf %63, %19 : vector<2x8x128xf32>
    %c2_i32 = arith.constant 2 : i32
    %65 = vector.broadcast %c2_i32 : i32 to vector<2x8x128xi32>
    %66 = arith.cmpi eq, %4, %65 : vector<2x8x128xi32>
    %67 = arith.extui %66 : vector<2x8x128xi1> to vector<2x8x128xi32>
    %68 = arith.sitofp %67 : vector<2x8x128xi32> to vector<2x8x128xf32>
    %c2 = arith.constant 2 : index
    %c0_43 = arith.constant 0 : index
    %c0_44 = arith.constant 0 : index
    %c0_45 = arith.constant 0 : index
    %69 = vector.load %arg7[%c2, %c0_43, %c0_44, %c0_45] : memref<4x2x8x128xf32, #tpu.memory_space<vmem>>, vector<1x2x8x128xf32>
    %70 = vector.shape_cast %69 : vector<1x2x8x128xf32> to vector<2x8x128xf32>
    %71 = arith.mulf %64, %68 : vector<2x8x128xf32>
    %72 = arith.addf %70, %71 : vector<2x8x128xf32>
    %c2_46 = arith.constant 2 : index
    %c0_47 = arith.constant 0 : index
    %c0_48 = arith.constant 0 : index
    %c0_49 = arith.constant 0 : index
    %73 = vector.load %arg7[%c2_46, %c0_47, %c0_48, %c0_49] : memref<4x2x8x128xf32, #tpu.memory_space<vmem>>, vector<1x2x8x128xf32>
    %74 = vector.shape_cast %73 : vector<1x2x8x128xf32> to vector<2x8x128xf32>
    %75 = vector.shape_cast %72 : vector<2x8x128xf32> to vector<1x2x8x128xf32>
    tpu.vector_store %arg7[%c2_46, %c0_47, %c0_48, %c0_49], %75 {strides = array<i32>} : memref<4x2x8x128xf32, #tpu.memory_space<vmem>>, vector<1x2x8x128xf32>,
    %c2_50 = arith.constant 2 : index
    %c0_51 = arith.constant 0 : index
    %c0_52 = arith.constant 0 : index
    %c0_53 = arith.constant 0 : index
    %76 = vector.load %arg8[%c2_50, %c0_51, %c0_52, %c0_53] : memref<4x2x8x128xf32, #tpu.memory_space<vmem>>, vector<1x2x8x128xf32>
    %77 = vector.shape_cast %76 : vector<1x2x8x128xf32> to vector<2x8x128xf32>
    %78 = arith.addf %64, %68 : vector<2x8x128xf32>
    %79 = arith.addf %77, %78 : vector<2x8x128xf32>
    %c2_54 = arith.constant 2 : index
    %c0_55 = arith.constant 0 : index
    %c0_56 = arith.constant 0 : index
    %c0_57 = arith.constant 0 : index
    %80 = vector.load %arg8[%c2_54, %c0_55, %c0_56, %c0_57] : memref<4x2x8x128xf32, #tpu.memory_space<vmem>>, vector<1x2x8x128xf32>
    %81 = vector.shape_cast %80 : vector<1x2x8x128xf32> to vector<2x8x128xf32>
    %82 = vector.shape_cast %79 : vector<2x8x128xf32> to vector<1x2x8x128xf32>
    tpu.vector_store %arg8[%c2_54, %c0_55, %c0_56, %c0_57], %82 {strides = array<i32>} : memref<4x2x8x128xf32, #tpu.memory_space<vmem>>, vector<1x2x8x128xf32>,
    %83 = vector.extract_strided_slice %10 {offsets = [0, 3, 0, 0], sizes = [2, 1, 8, 128], strides = [1, 1, 1, 1]} : vector<2x4x8x128xf32> to vector<2x1x8x128xf32>
    %84 = vector.shape_cast %83 : vector<2x1x8x128xf32> to vector<2x8x128xf32>
    %85 = arith.mulf %84, %19 : vector<2x8x128xf32>
    %c3_i32 = arith.constant 3 : i32
    %86 = vector.broadcast %c3_i32 : i32 to vector<2x8x128xi32>
    %87 = arith.cmpi eq, %4, %86 : vector<2x8x128xi32>
    %88 = arith.extui %87 : vector<2x8x128xi1> to vector<2x8x128xi32>
    %89 = arith.sitofp %88 : vector<2x8x128xi32> to vector<2x8x128xf32>
    %c3 = arith.constant 3 : index
    %c0_58 = arith.constant 0 : index
    %c0_59 = arith.constant 0 : index
    %c0_60 = arith.constant 0 : index
    %90 = vector.load %arg7[%c3, %c0_58, %c0_59, %c0_60] : memref<4x2x8x128xf32, #tpu.memory_space<vmem>>, vector<1x2x8x128xf32>
    %91 = vector.shape_cast %90 : vector<1x2x8x128xf32> to vector<2x8x128xf32>
    %92 = arith.mulf %85, %89 : vector<2x8x128xf32>
    %93 = arith.addf %91, %92 : vector<2x8x128xf32>
    %c3_61 = arith.constant 3 : index
    %c0_62 = arith.constant 0 : index
    %c0_63 = arith.constant 0 : index
    %c0_64 = arith.constant 0 : index
    %94 = vector.load %arg7[%c3_61, %c0_62, %c0_63, %c0_64] : memref<4x2x8x128xf32, #tpu.memory_space<vmem>>, vector<1x2x8x128xf32>
    %95 = vector.shape_cast %94 : vector<1x2x8x128xf32> to vector<2x8x128xf32>
    %96 = vector.shape_cast %93 : vector<2x8x128xf32> to vector<1x2x8x128xf32>
    tpu.vector_store %arg7[%c3_61, %c0_62, %c0_63, %c0_64], %96 {strides = array<i32>} : memref<4x2x8x128xf32, #tpu.memory_space<vmem>>, vector<1x2x8x128xf32>,
    %c3_65 = arith.constant 3 : index
    %c0_66 = arith.constant 0 : index
    %c0_67 = arith.constant 0 : index
    %c0_68 = arith.constant 0 : index
    %97 = vector.load %arg8[%c3_65, %c0_66, %c0_67, %c0_68] : memref<4x2x8x128xf32, #tpu.memory_space<vmem>>, vector<1x2x8x128xf32>
    %98 = vector.shape_cast %97 : vector<1x2x8x128xf32> to vector<2x8x128xf32>
    %99 = arith.addf %85, %89 : vector<2x8x128xf32>
    %100 = arith.addf %98, %99 : vector<2x8x128xf32>
    %c3_69 = arith.constant 3 : index
    %c0_70 = arith.constant 0 : index
    %c0_71 = arith.constant 0 : index
    %c0_72 = arith.constant 0 : index
    %101 = vector.load %arg8[%c3_69, %c0_70, %c0_71, %c0_72] : memref<4x2x8x128xf32, #tpu.memory_space<vmem>>, vector<1x2x8x128xf32>
    %102 = vector.shape_cast %101 : vector<1x2x8x128xf32> to vector<2x8x128xf32>
    %103 = vector.shape_cast %100 : vector<2x8x128xf32> to vector<1x2x8x128xf32>
    tpu.vector_store %arg8[%c3_69, %c0_70, %c0_71, %c0_72], %103 {strides = array<i32>} : memref<4x2x8x128xf32, #tpu.memory_space<vmem>>, vector<1x2x8x128xf32>,
    %c0_i32_73 = arith.constant 0 : i32
    %104 = arith.cmpi eq, %arg1, %c0_i32_73 : i32
    %105 = arith.extui %104 : i1 to i32
    %c0_i32_74 = arith.constant 0 : i32
    %106 = arith.cmpi ne, %105, %c0_i32_74 : i32
    scf.if %106 {
      %c0_75 = arith.constant 0 : index
      %c0_76 = arith.constant 0 : index
      %c0_77 = arith.constant 0 : index
      %c0_78 = arith.constant 0 : index
      %107 = vector.load %arg7[%c0_75, %c0_76, %c0_77, %c0_78] : memref<4x2x8x128xf32, #tpu.memory_space<vmem>>, vector<4x2x8x128xf32>
      %108 = vector.shape_cast %107 : vector<4x2x8x128xf32> to vector<1x4x2x8x128xf32>
      %c0_79 = arith.constant 0 : index
      %c0_80 = arith.constant 0 : index
      %c0_81 = arith.constant 0 : index
      %c0_82 = arith.constant 0 : index
      %c0_83 = arith.constant 0 : index
      %109 = vector.load %arg5[%c0_79, %c0_80, %c0_81, %c0_82, %c0_83] : memref<1x4x2x8x128xf32, #tpu.memory_space<vmem>>, vector<1x4x2x8x128xf32>
      tpu.vector_store %arg5[%c0_79, %c0_80, %c0_81, %c0_82, %c0_83], %108 {strides = array<i32>} : memref<1x4x2x8x128xf32, #tpu.memory_space<vmem>>, vector<1x4x2x8x128xf32>,
      %c0_84 = arith.constant 0 : index
      %c0_85 = arith.constant 0 : index
      %c0_86 = arith.constant 0 : index
      %c0_87 = arith.constant 0 : index
      %110 = vector.load %arg8[%c0_84, %c0_85, %c0_86, %c0_87] : memref<4x2x8x128xf32, #tpu.memory_space<vmem>>, vector<4x2x8x128xf32>
      %111 = vector.shape_cast %110 : vector<4x2x8x128xf32> to vector<1x4x2x8x128xf32>
      %c0_88 = arith.constant 0 : index
      %c0_89 = arith.constant 0 : index
      %c0_90 = arith.constant 0 : index
      %c0_91 = arith.constant 0 : index
      %c0_92 = arith.constant 0 : index
      %112 = vector.load %arg6[%c0_88, %c0_89, %c0_90, %c0_91, %c0_92] : memref<1x4x2x8x128xf32, #tpu.memory_space<vmem>>, vector<1x4x2x8x128xf32>
      tpu.vector_store %arg6[%c0_88, %c0_89, %c0_90, %c0_91, %c0_92], %111 {strides = array<i32>} : memref<1x4x2x8x128xf32, #tpu.memory_space<vmem>>, vector<1x4x2x8x128xf32>,
    } else {
    }
    return
  }
  func.func @transform_0(%arg0: i32, %arg1: i32) -> (i32, i32, i32, i32) {
    %c1_i32 = arith.constant 1 : i32
    %0 = arith.muli %arg0, %c1_i32 : i32
    %1 = arith.addi %0, %arg1 : i32
    %c0_i32 = arith.constant 0 : i32
    %c0_i32_0 = arith.constant 0 : i32
    %c0_i32_1 = arith.constant 0 : i32
    %c0_i32_2 = arith.constant 0 : i32
    return %c0_i32, %c0_i32_0, %1, %c0_i32_1 : i32, i32, i32, i32
  }
  func.func @transform_1(%arg0: i32, %arg1: i32) -> (i32, i32, i32) {
    %c1_i32 = arith.constant 1 : i32
    %0 = arith.muli %arg0, %c1_i32 : i32
    %1 = arith.addi %0, %arg1 : i32
    %c0_i32 = arith.constant 0 : i32
    %c0_i32_0 = arith.constant 0 : i32
    %c0_i32_1 = arith.constant 0 : i32
    return %c0_i32, %1, %c0_i32_0 : i32, i32, i32
  }
  func.func @transform_2(%arg0: i32, %arg1: i32) -> (i32, i32) {
    %c1_i32 = arith.constant 1 : i32
    %0 = arith.muli %arg0, %c1_i32 : i32
    %1 = arith.addi %0, %arg1 : i32
    %c0_i32 = arith.constant 0 : i32
    %c0_i32_0 = arith.constant 0 : i32
    return %1, %c0_i32 : i32, i32
  }
  func.func @transform_3(%arg0: i32, %arg1: i32) -> (i32, i32, i32, i32, i32) {
    %c0_i32 = arith.constant 0 : i32
    %c0_i32_0 = arith.constant 0 : i32
    %c0_i32_1 = arith.constant 0 : i32
    %c0_i32_2 = arith.constant 0 : i32
    %c0_i32_3 = arith.constant 0 : i32
    return %arg0, %c0_i32, %c0_i32_0, %c0_i32_1, %c0_i32_2 : i32, i32, i32, i32, i32
  }
  func.func @transform_4(%arg0: i32, %arg1: i32) -> (i32, i32, i32, i32, i32) {
    %c0_i32 = arith.constant 0 : i32
    %c0_i32_0 = arith.constant 0 : i32
    %c0_i32_1 = arith.constant 0 : i32
    %c0_i32_2 = arith.constant 0 : i32
    %c0_i32_3 = arith.constant 0 : i32
    return %arg0, %c0_i32, %c0_i32_0, %c0_i32_1, %c0_i32_2 : i32, i32, i32, i32, i32
  }
}

</mosaic_0001>

<llo_original>
// kernel: tpu_custom_call.1
$region0: #{tpu_custom_call.1}
  #allocation0 [shape = 'u32[]', space=smem, size = 0x4, offset = 0x4, fixed_abs, tag = 'smem constant byte address 0x4 - core index']
  #allocation1 [shape = 'u32[72,128]{1,0:T(1,128)}', space=vmem, size = 0x9000, scoped, tag = 'internal scratch']
  #allocation2 [shape = 'f32[4,2,8,128]{3,2,1,0:T(8,128)}', space=vmem, size = 0x8000, scoped, tag = 'scratch operand']
  #allocation3 [shape = 'f32[4,2,8,128]{3,2,1,0:T(8,128)}', space=vmem, size = 0x8000, scoped, tag = 'scratch operand']
  %s0 = inlined_call_operand.hbm [shape: f32[2,4,8,128], index: 0, kind: input, shape index: {}]
  %s1 = inlined_call_operand.hbm [shape: s32[2,8,128], index: 1, kind: input, shape index: {}]
  %s2 = inlined_call_operand.hbm [shape: f32[8,128], index: 2, kind: input, shape index: {}]
  %s3 = inlined_call_operand.hbm [shape: f32[1,4,2,8,128], index: 3, kind: output, shape index: {0}]
  %s4 = inlined_call_operand.hbm [shape: f32[1,4,2,8,128], index: 4, kind: output, shape index: {1}]
  %5 = xla_tuple %s3, %s4
  %s6 = sld [smem:[#allocation0]]
  $region50: #{tpu_custom_call.1} parent=0
    _
  %s8 = ssub.s32 1, %s6
  %s9 = scalar_select 0, %s8, %s6
  $region1: #{tpu_custom_call.1} parent=0
    #allocation4 [shape = 'u8[32768]{0}', space=vmem, size = 0x8000, scoped, tag = 'input window, operand 0, single buffered']
    #allocation5 [shape = 's32[1]{0}', space=sflag, size = 0x4, scoped, tag = 'scoped memory for tpu_custom_call.1']
    #allocation6 [shape = 's32[1]{0}', space=sflag, size = 0x4, scoped, tag = 'scoped memory for tpu_custom_call.1']
    #allocation7 [shape = 'u8[8192]{0}', space=vmem, size = 0x2000, scoped, tag = 'input window, operand 1, single buffered']
    #allocation8 [shape = 's32[1]{0}', space=sflag, size = 0x4, scoped, tag = 'scoped memory for tpu_custom_call.1']
    #allocation9 [shape = 'u8[4096]{0}', space=vmem, size = 0x1000, scoped, tag = 'input window, operand 2, single buffered']
    #allocation10 [shape = 'u8[32768]{0}', space=vmem, size = 0x8000, scoped, tag = 'output window, operand 0, single buffered']
    #allocation11 [shape = 'u8[32768]{0}', space=vmem, size = 0x8000, scoped, tag = 'output window, operand 1, single buffered']
    #allocation12 [shape = 's32[1]{0}', space=sflag, size = 0x4, scoped, tag = 'scoped memory for tpu_custom_call.1']
    %10 = vsyncpa [#allocation5], 0
    %11 = vsyncpa [#allocation8], 0
    %12 = vsyncpa [#allocation6], 0
    %13 = vsyncpa [#allocation12], 0
    // Predicated region
    $region2: #{tpu_custom_call.1} parent=1 // pred_check
      _
    $region3: #{tpu_custom_call.1} parent=1 // pred_check_branch
      %15 = sbr.rel (0) target = $region5
    $region4: #{tpu_custom_call.1} parent=1 // pred_region
      %s16 = sadd.s32 0, 0
      %18 = vsyncadd [#allocation5], 0
      %s19 = smul.addr %s16, 8
      %s20 = scalar_lea.hbm %s0, %s19
      %s21 = sshll.u32 %s20, 4
      %s22 = int_to_ptr.hbm [resolvable:$true] %s21
      %s23 = sshll.u32 [#allocation4], 4
      %s24 = int_to_ptr.vmem [resolvable:$true] %s23
      %29 = dma.hbm_to_vmem [thread:$0]  %s22, 1024, %s24, [#allocation5], 128, 128, 8
    $region5: #{tpu_custom_call.1} parent=1 // pred_fallthru
      _
    // Predicated region
    $region6: #{tpu_custom_call.1} parent=1 // pred_check
      _
    $region7: #{tpu_custom_call.1} parent=1 // pred_check_branch
      %31 = sbr.rel (0) target = $region9
    $region8: #{tpu_custom_call.1} parent=1 // pred_region
      %s32 = sadd.s32 0, 0
      %34 = vsyncadd [#allocation8], 0
      %s35 = smul.addr %s32, 8
      %s36 = scalar_lea.hbm %s1, %s35
      %s37 = sshll.u32 %s36, 4
      %s38 = int_to_ptr.hbm [resolvable:$true] %s37
      %s39 = sshll.u32 [#allocation7], 4
      %s40 = int_to_ptr.vmem [resolvable:$true] %s39
      %45 = dma.hbm_to_vmem [thread:$0]  %s38, 256, %s40, [#allocation8], 128, 128, 8
    $region9: #{tpu_custom_call.1} parent=1 // pred_fallthru
      _
    // Predicated region
    $region10: #{tpu_custom_call.1} parent=1 // pred_check
      _
    $region11: #{tpu_custom_call.1} parent=1 // pred_check_branch
      %47 = sbr.rel (0) target = $region13
    $region12: #{tpu_custom_call.1} parent=1 // pred_region
      %s48 = sadd.s32 0, 0
      %50 = vsyncadd [#allocation8], 0
      %s51 = smul.addr %s48, 8
      %s52 = scalar_lea.hbm %s2, %s51
      %s54 = sshll.u32 %s52, 4
      %s55 = int_to_ptr.hbm [resolvable:$true] %s54
      %s56 = sshll.u32 [#allocation9], 4
      %s57 = int_to_ptr.vmem [resolvable:$true] %s56
      %59 = dma.hbm_to_vmem [thread:$0]  %s55, 128, %s57, [#allocation8]
    $region13: #{tpu_custom_call.1} parent=1 // pred_fallthru
      _
    // Predicated region
    $region14: #{tpu_custom_call.1} parent=1 // pred_check
      _
    $region15: #{tpu_custom_call.1} parent=1 // pred_check_branch
      %61 = sbr.rel (0) target = $region17
    $region16: #{tpu_custom_call.1} parent=1 // pred_region
      %63 = dma.done [#allocation5], 1024
    $region17: #{tpu_custom_call.1} parent=1 // pred_fallthru
      _
    // Predicated region
    $region18: #{tpu_custom_call.1} parent=1 // pred_check
      _
    $region19: #{tpu_custom_call.1} parent=1 // pred_check_branch
      %65 = sbr.rel (0) target = $region21
    $region20: #{tpu_custom_call.1} parent=1 // pred_region
      %67 = dma.done [#allocation8], 256
    $region21: #{tpu_custom_call.1} parent=1 // pred_fallthru
      _
    // Predicated region
    $region22: #{tpu_custom_call.1} parent=1 // pred_check
      _
    $region23: #{tpu_custom_call.1} parent=1 // pred_check_branch
      %69 = sbr.rel (0) target = $region25
    $region24: #{tpu_custom_call.1} parent=1 // pred_region
      %71 = dma.done [#allocation8], 128
    $region25: #{tpu_custom_call.1} parent=1 // pred_fallthru
      _
    %s72 = sadd.s32 0, 0
    %s73 = sadd.s32 0, 0
    %s74 = sadd.s32 0, 0
    %p75 = scmp.eq.s32.totalorder 0, 0
    // Predicated region
    $region26: #{tpu_custom_call.1} parent=1 // pred_check
      %p76 = pneg %p75
    $region27: #{tpu_custom_call.1} parent=1 // pred_check_branch
      %78 = sbr.rel (%p76) target = $region29
    $region28: #{tpu_custom_call.1} parent=1 // pred_region
      %79 = vst [vmem:[#allocation2] sm:$0xff] 0.0
      %80 = vst [vmem:[#allocation2 + $0x8] sm:$0xff] 0.0
      %81 = vst [vmem:[#allocation2 + $0x10] sm:$0xff] 0.0
      %82 = vst [vmem:[#allocation2 + $0x18] sm:$0xff] 0.0
      %83 = vst [vmem:[#allocation2 + $0x20] sm:$0xff] 0.0
      %84 = vst [vmem:[#allocation2 + $0x28] sm:$0xff] 0.0
      %85 = vst [vmem:[#allocation2 + $0x30] sm:$0xff] 0.0
      %86 = vst [vmem:[#allocation2 + $0x38] sm:$0xff] 0.0
      %87 = vst [vmem:[#allocation3] sm:$0xff] 0.0
      %88 = vst [vmem:[#allocation3 + $0x8] sm:$0xff] 0.0
      %89 = vst [vmem:[#allocation3 + $0x10] sm:$0xff] 0.0
      %90 = vst [vmem:[#allocation3 + $0x18] sm:$0xff] 0.0
      %91 = vst [vmem:[#allocation3 + $0x20] sm:$0xff] 0.0
      %92 = vst [vmem:[#allocation3 + $0x28] sm:$0xff] 0.0
      %93 = vst [vmem:[#allocation3 + $0x30] sm:$0xff] 0.0
      %94 = vst [vmem:[#allocation3 + $0x38] sm:$0xff] 0.0
    $region29: #{tpu_custom_call.1} parent=1 // pred_fallthru
      _
    %v95 = vld [vmem:[#allocation4] sm:$0xff]
    %v96 = vld [vmem:[#allocation4 + $0x8] sm:$0xff]
    %v97 = vld [vmem:[#allocation4 + $0x10] sm:$0xff]
    %v98 = vld [vmem:[#allocation4 + $0x18] sm:$0xff]
    %v99 = vld [vmem:[#allocation4 + $0x20] sm:$0xff]
    %v100 = vld [vmem:[#allocation4 + $0x28] sm:$0xff]
    %v101 = vld [vmem:[#allocation4 + $0x30] sm:$0xff]
    %v102 = vld [vmem:[#allocation4 + $0x38] sm:$0xff]
    %v103 = vld [vmem:[#allocation7] sm:$0xff]
    %v104 = vld [vmem:[#allocation7 + $0x8] sm:$0xff]
    %v105 = vld [vmem:[#allocation9] sm:$0xff]
    %v106 = vmax.f32 %v95, %v97
    %v107 = vmax.f32 %v96, %v98
    %v108 = vmax.f32 %v106, %v107
    %v109 = vmax.f32 %v99, %v101
    %v110 = vmax.f32 %v100, %v102
    %v111 = vmax.f32 %v109, %v110
    %v112 = vsub.f32 %v95, %v108
    %v113 = vsub.f32 %v96, %v108
    %v114 = vsub.f32 %v97, %v108
    %v115 = vsub.f32 %v98, %v108
    %v116 = vsub.f32 %v99, %v111
    %v117 = vsub.f32 %v100, %v111
    %v118 = vsub.f32 %v101, %v111
    %v119 = vsub.f32 %v102, %v111
    %v120 = vmul.f32 %v112, 1.442695
    %v121 = vpow.pop %v120
    %v122 = vmul.f32 %v113, 1.442695
    %v123 = vpow.pop %v122
    %v124 = vmul.f32 %v114, 1.442695
    %v125 = vpow.pop %v124
    %v126 = vmul.f32 %v115, 1.442695
    %v127 = vpow.pop %v126
    %v128 = vmul.f32 %v116, 1.442695
    %v129 = vpow.pop %v128
    %v130 = vmul.f32 %v117, 1.442695
    %v131 = vpow.pop %v130
    %v132 = vmul.f32 %v118, 1.442695
    %v133 = vpow.pop %v132
    %v134 = vmul.f32 %v119, 1.442695
    %v135 = vpow.pop %v134
    %v136 = vadd.f32 %v121, %v123
    %v137 = vadd.f32 %v136, %v125
    %v138 = vadd.f32 %v137, %v127
    %v139 = vadd.f32 %v129, %v131
    %v140 = vadd.f32 %v139, %v133
    %v141 = vadd.f32 %v140, %v135
    %v142 = vrcp.pop %v138
    %v143 = vrcp.pop %v141
    %v144 = vmul.f32 %v138, %v142
    %v145 = vmul.f32 %v141, %v143
    %v146 = vsub.f32 2.0, %v144
    %v147 = vsub.f32 2.0, %v145
    %v148 = vmul.f32 %v142, %v146
    %v149 = vmul.f32 %v143, %v147
    %v150 = vmul.f32 %v148, %v105
    %v151 = vmul.f32 %v149, %v105
    %v152 = vmul.f32 %v121, %v150
    %v153 = vmul.f32 %v129, %v151
    %vm154 = vcmp.eq.s32.totalorder %v103, 0
    %vm155 = vcmp.eq.s32.totalorder %v104, 0
    %v156 = vsel %vm154, 1, 0
    %v157 = vsel %vm155, 1, 0
    %v158 = vcvt.s32.f32 %v156
    %v159 = vcvt.s32.f32 %v157
    %v160 = vld [vmem:[#allocation2] sm:$0xff]
    %v161 = vld [vmem:[#allocation2 + $0x8] sm:$0xff]
    %v162 = vmul.f32 %v152, %v158
    %v163 = vmul.f32 %v153, %v159
    %v164 = vadd.f32 %v160, %v162
    %v165 = vadd.f32 %v161, %v163
    %166 = vst [vmem:[#allocation2] sm:$0xff] %v164
    %167 = vst [vmem:[#allocation2 + $0x8] sm:$0xff] %v165
    %v168 = vld [vmem:[#allocation3] sm:$0xff]
    %v169 = vld [vmem:[#allocation3 + $0x8] sm:$0xff]
    %v170 = vadd.f32 %v152, %v158
    %v171 = vadd.f32 %v153, %v159
    %v172 = vadd.f32 %v168, %v170
    %v173 = vadd.f32 %v169, %v171
    %174 = vst [vmem:[#allocation3] sm:$0xff] %v172
    %175 = vst [vmem:[#allocation3 + $0x8] sm:$0xff] %v173
    %v176 = vmul.f32 %v123, %v150
    %v177 = vmul.f32 %v131, %v151
    %vm178 = vcmp.eq.s32.totalorder %v103, 1
    %vm179 = vcmp.eq.s32.totalorder %v104, 1
    %v180 = vsel %vm178, 1, 0
    %v181 = vsel %vm179, 1, 0
    %v182 = vcvt.s32.f32 %v180
    %v183 = vcvt.s32.f32 %v181
    %s184 = scalar_lea.vmem [#allocation2], 16
    %v185 = vld [vmem:[%s184] sm:$0xff]
    %v186 = vld [vmem:[%s184 + $0x8] sm:$0xff]
    %v187 = vmul.f32 %v176, %v182
    %v188 = vmul.f32 %v177, %v183
    %v189 = vadd.f32 %v185, %v187
    %v190 = vadd.f32 %v186, %v188
    %191 = vst [vmem:[%s184] sm:$0xff] %v189
    %192 = vst [vmem:[%s184 + $0x8] sm:$0xff] %v190
    %s193 = scalar_lea.vmem [#allocation3], 16
    %v194 = vld [vmem:[%s193] sm:$0xff]
    %v195 = vld [vmem:[%s193 + $0x8] sm:$0xff]
    %v196 = vadd.f32 %v176, %v182
    %v197 = vadd.f32 %v177, %v183
    %v198 = vadd.f32 %v194, %v196
    %v199 = vadd.f32 %v195, %v197
    %200 = vst [vmem:[%s193] sm:$0xff] %v198
    %201 = vst [vmem:[%s193 + $0x8] sm:$0xff] %v199
    %v202 = vmul.f32 %v125, %v150
    %v203 = vmul.f32 %v133, %v151
    %vm204 = vcmp.eq.s32.totalorder %v103, 2
    %vm205 = vcmp.eq.s32.totalorder %v104, 2
    %v206 = vsel %vm204, 1, 0
    %v207 = vsel %vm205, 1, 0
    %v208 = vcvt.s32.f32 %v206
    %v209 = vcvt.s32.f32 %v207
    %s210 = scalar_lea.vmem [#allocation2], 32
    %v211 = vld [vmem:[%s210] sm:$0xff]
    %v212 = vld [vmem:[%s210 + $0x8] sm:$0xff]
    %v213 = vmul.f32 %v202, %v208
    %v214 = vmul.f32 %v203, %v209
    %v215 = vadd.f32 %v211, %v213
    %v216 = vadd.f32 %v212, %v214
    %217 = vst [vmem:[%s210] sm:$0xff] %v215
    %218 = vst [vmem:[%s210 + $0x8] sm:$0xff] %v216
    %s219 = scalar_lea.vmem [#allocation3], 32
    %v220 = vld [vmem:[%s219] sm:$0xff]
    %v221 = vld [vmem:[%s219 + $0x8] sm:$0xff]
    %v222 = vadd.f32 %v202, %v208
    %v223 = vadd.f32 %v203, %v209
    %v224 = vadd.f32 %v220, %v222
    %v225 = vadd.f32 %v221, %v223
    %226 = vst [vmem:[%s219] sm:$0xff] %v224
    %227 = vst [vmem:[%s219 + $0x8] sm:$0xff] %v225
    %v228 = vmul.f32 %v127, %v150
    %v229 = vmul.f32 %v135, %v151
    %vm230 = vcmp.eq.s32.totalorder %v103, 3
    %vm231 = vcmp.eq.s32.totalorder %v104, 3
    %v232 = vsel %vm230, 1, 0
    %v233 = vsel %vm231, 1, 0
    %v234 = vcvt.s32.f32 %v232
    %v235 = vcvt.s32.f32 %v233
    %s236 = scalar_lea.vmem [#allocation2], 48
    %v237 = vld [vmem:[%s236] sm:$0xff]
    %v238 = vld [vmem:[%s236 + $0x8] sm:$0xff]
    %v239 = vmul.f32 %v228, %v234
    %v240 = vmul.f32 %v229, %v235
    %v241 = vadd.f32 %v237, %v239
    %v242 = vadd.f32 %v238, %v240
    %243 = vst [vmem:[%s236] sm:$0xff] %v241
    %244 = vst [vmem:[%s236 + $0x8] sm:$0xff] %v242
    %s245 = scalar_lea.vmem [#allocation3], 48
    %v246 = vld [vmem:[%s245] sm:$0xff]
    %v247 = vld [vmem:[%s245 + $0x8] sm:$0xff]
    %v248 = vadd.f32 %v228, %v234
    %v249 = vadd.f32 %v229, %v235
    %v250 = vadd.f32 %v246, %v248
    %v251 = vadd.f32 %v247, %v249
    %252 = vst [vmem:[%s245] sm:$0xff] %v250
    %253 = vst [vmem:[%s245 + $0x8] sm:$0xff] %v251
    // Predicated region
    $region30: #{tpu_custom_call.1} parent=1 // pred_check
      %p254 = pneg %p75
    $region31: #{tpu_custom_call.1} parent=1 // pred_check_branch
      %256 = sbr.rel (%p254) target = $region33
    $region32: #{tpu_custom_call.1} parent=1 // pred_region
      %v257 = vld [vmem:[#allocation2] sm:$0xff]
      %v258 = vld [vmem:[#allocation2 + $0x8] sm:$0xff]
      %v259 = vld [vmem:[#allocation2 + $0x10] sm:$0xff]
      %v260 = vld [vmem:[#allocation2 + $0x18] sm:$0xff]
      %v261 = vld [vmem:[#allocation2 + $0x20] sm:$0xff]
      %v262 = vld [vmem:[#allocation2 + $0x28] sm:$0xff]
      %v263 = vld [vmem:[#allocation2 + $0x30] sm:$0xff]
      %v264 = vld [vmem:[#allocation2 + $0x38] sm:$0xff]
      %265 = vst [vmem:[#allocation10] sm:$0xff] %v257
      %266 = vst [vmem:[#allocation10 + $0x8] sm:$0xff] %v258
      %267 = vst [vmem:[#allocation10 + $0x10] sm:$0xff] %v259
      %268 = vst [vmem:[#allocation10 + $0x18] sm:$0xff] %v260
      %269 = vst [vmem:[#allocation10 + $0x20] sm:$0xff] %v261
      %270 = vst [vmem:[#allocation10 + $0x28] sm:$0xff] %v262
      %271 = vst [vmem:[#allocation10 + $0x30] sm:$0xff] %v263
      %272 = vst [vmem:[#allocation10 + $0x38] sm:$0xff] %v264
      %v273 = vld [vmem:[#allocation3] sm:$0xff]
      %v274 = vld [vmem:[#allocation3 + $0x8] sm:$0xff]
      %v275 = vld [vmem:[#allocation3 + $0x10] sm:$0xff]
      %v276 = vld [vmem:[#allocation3 + $0x18] sm:$0xff]
      %v277 = vld [vmem:[#allocation3 + $0x20] sm:$0xff]
      %v278 = vld [vmem:[#allocation3 + $0x28] sm:$0xff]
      %v279 = vld [vmem:[#allocation3 + $0x30] sm:$0xff]
      %v280 = vld [vmem:[#allocation3 + $0x38] sm:$0xff]
      %281 = vst [vmem:[#allocation11] sm:$0xff] %v273
      %282 = vst [vmem:[#allocation11 + $0x8] sm:$0xff] %v274
      %283 = vst [vmem:[#allocation11 + $0x10] sm:$0xff] %v275
      %284 = vst [vmem:[#allocation11 + $0x18] sm:$0xff] %v276
      %285 = vst [vmem:[#allocation11 + $0x20] sm:$0xff] %v277
      %286 = vst [vmem:[#allocation11 + $0x28] sm:$0xff] %v278
      %287 = vst [vmem:[#allocation11 + $0x30] sm:$0xff] %v279
      %288 = vst [vmem:[#allocation11 + $0x38] sm:$0xff] %v280
    $region33: #{tpu_custom_call.1} parent=1 // pred_fallthru
      _
    // Predicated region
    $region34: #{tpu_custom_call.1} parent=1 // pred_check
      _
    $region35: #{tpu_custom_call.1} parent=1 // pred_check_branch
      %290 = sbr.rel (0) target = $region37
    $region36: #{tpu_custom_call.1} parent=1 // pred_region
      %292 = vsyncadd [#allocation6], 0
      %s293 = sshll.u32 [#allocation10], 4
      %s294 = int_to_ptr.vmem [resolvable:$true] %s293
      %s295 = sshll.u32 %s3, 4
      %s296 = int_to_ptr.hbm [resolvable:$true] %s295
      %301 = dma.vmem_to_hbm [thread:$0]  %s294, 1024, %s296, [#allocation6], 128, 128, 8
    $region37: #{tpu_custom_call.1} parent=1 // pred_fallthru
      _
    // Predicated region
    $region38: #{tpu_custom_call.1} parent=1 // pred_check
      _
    $region39: #{tpu_custom_call.1} parent=1 // pred_check_branch
      %303 = sbr.rel (0) target = $region41
    $region40: #{tpu_custom_call.1} parent=1 // pred_region
      %305 = vsyncadd [#allocation12], 0
      %s306 = sshll.u32 [#allocation11], 4
      %s307 = int_to_ptr.vmem [resolvable:$true] %s306
      %s308 = sshll.u32 %s4, 4
      %s309 = int_to_ptr.hbm [resolvable:$true] %s308
      %314 = dma.vmem_to_hbm [thread:$0]  %s307, 1024, %s309, [#allocation12], 128, 128, 8
    $region41: #{tpu_custom_call.1} parent=1 // pred_fallthru
      _
    // Predicated region
    $region42: #{tpu_custom_call.1} parent=1 // pred_check
      _
    $region43: #{tpu_custom_call.1} parent=1 // pred_check_branch
      %316 = sbr.rel (0) target = $region45
    $region44: #{tpu_custom_call.1} parent=1 // pred_region
      %318 = dma.done [#allocation6], 1024
    $region45: #{tpu_custom_call.1} parent=1 // pred_fallthru
      _
    // Predicated region
    $region46: #{tpu_custom_call.1} parent=1 // pred_check
      _
    $region47: #{tpu_custom_call.1} parent=1 // pred_check_branch
      %320 = sbr.rel (0) target = $region49
    $region48: #{tpu_custom_call.1} parent=1 // pred_region
      %322 = dma.done [#allocation12], 1024
    $region49: #{tpu_custom_call.1} parent=1 // pred_fallthru
      _
    %323 = vsyncpa [#allocation5], 1
    %324 = vsyncpa [#allocation8], 1
    %325 = vsyncpa [#allocation6], 1
    %326 = vsyncpa [#allocation12], 1

</llo_original>
